<compile_context>
chip_gen: v7x
topology: tpu7x:2x2x1
jax: 0.10.0
libtpu: 0.0.40
codegen_flags: <defaults>
</compile_context>

<pallas_src>
import functools

import jax
import jax.numpy as jnp
from jax.experimental import pallas as pl
from jax.experimental.pallas import tpu as pltpu


# ----------------------------- small helpers ---------------------------------
def _vmem_capacity_bytes():
    cap = 128 * 1024 * 1024
    try:
        cap = int(getattr(pltpu.get_tpu_info(), "vmem_capacity_bytes", cap))
    except Exception:
        pass
    return cap


def _vmem_limit_bytes():
    """Explicit scoped-VMEM budget: ~3/4 of physical capacity, capped at 100 MiB."""
    return int(min(100 * 1024 * 1024, (_vmem_capacity_bytes() * 3) // 4))


def pick_tile(S):
    """Query/seq tile: largest 128-multiple that divides S, generation-aware cap.

    v5e/v6e (128 MiB VMEM): up to 512 (fewer grid steps, bigger M per matmul).
    v7x-class (64 MiB VMEM): cap at 256 to leave headroom for weights + temps.
    """
    max_t = 512 if _vmem_capacity_bytes() >= (96 << 20) else 256
    for t in (512, 256, 128):
        if t <= max_t and S % t == 0:
            return t
    return S


_BUFFERED1_SUPPORTED = None


def _buffered1_supported():
    """Narrow feature probe for pl.Buffered(1) on constant-index BlockSpecs.

    Replaces the previous blanket try/except around the real layer kernel (which could have
    silently swallowed genuine VMEM/lowering failures).  The probe is a tiny dedicated kernel.
    """
    global _BUFFERED1_SUPPORTED
    if _BUFFERED1_SUPPORTED is not None:
        return _BUFFERED1_SUPPORTED
    if not hasattr(pl, "Buffered"):
        _BUFFERED1_SUPPORTED = False
        return False

    def probe_kernel(w_ref, x_ref, o_ref):
        o_ref[...] = x_ref[...] + w_ref[...]

    try:
        w = jnp.zeros((8, 128), jnp.float32)
        x = jnp.zeros((16, 128), jnp.float32)
        f = pl.pallas_call(
            probe_kernel,
            out_shape=jax.ShapeDtypeStruct((16, 128), jnp.float32),
            grid=(2,),
            in_specs=[pl.BlockSpec((8, 128), lambda i: (0, 0),
                                   pipeline_mode=pl.Buffered(1)),
                      pl.BlockSpec((8, 128), lambda i: (i, 0))],
            out_specs=pl.BlockSpec((8, 128), lambda i: (i, 0)))
        jax.block_until_ready(f(w, x))
        _BUFFERED1_SUPPORTED = True
    except Exception:
        _BUFFERED1_SUPPORTED = False
    return _BUFFERED1_SUPPORTED


def _weight_spec_kwargs():
    # Constant index map -> the weight tile never changes; a single buffer halves weight VMEM
    # (matters most on v7x's 64 MiB).  Only applied when the probe says it is supported.
    if _buffered1_supported():
        return {"pipeline_mode": pl.Buffered(1)}
    return {}


# ----------------------------- Pallas kernels ---------------------------------
def qkv_proj_kernel(x_ref, wqkv_ref, bqkv_ref, q_ref, k_ref, v_ref):
    """Fused QKV projection for one (batch, seq-tile) grid point.

    x_ref:    [TS, H] f32
    wqkv_ref: [H, 3H] bf16 (1/sqrt(hd) already folded into the Q columns)
    bqkv_ref: [1, 3H] f32
    outputs:  q/k/v [TS, H] bf16
    """
    H = x_ref.shape[-1]
    y = jnp.dot(x_ref[...].astype(jnp.bfloat16), wqkv_ref[...],
                preferred_element_type=jnp.float32) + bqkv_ref[...]
    yb = y.astype(jnp.bfloat16)          # cast once, THEN slice (halves copied bytes)
    q_ref[...] = yb[:, :H]
    k_ref[...] = yb[:, H:2 * H]
    v_ref[...] = yb[:, 2 * H:]


def attn_ffn_kernel(x_ref, q_ref, k_ref, v_ref, mask_ref,
                    wo_ref, bo_ref, w1_ref, b1_ref, w2_ref, b2_ref,
                    g1_ref, be1_ref, g2_ref, be2_ref,
                    o_ref,
                    ctx_h_scr, ctx_scr, *, num_heads):
    """Attention (pre-projected Q/K/V) + output proj + FFN + both LayerNorms for one
    (batch, query-tile) grid point.  Post-LN, exact erf-GELU (torch activation='gelu').

    x_ref:    [TQ, H]       f32  residual stream for this tile
    q_ref:    [NH, TQ, hd]  bf16 (scale folded into W_q)
    k_ref:    [NH, S,  hd]  bf16
    v_ref:    [NH, S,  hd]  bf16
    mask_ref: [1, S]        f32  additive key-padding bias
    """
    x = x_ref[...]
    mbias = mask_ref[...]                                 # [1, S] -> broadcasts over queries
    hd = q_ref.shape[-1]

    # ---- per-head attention: fori_loop bounds live ranges to ONE [TQ,S] score temp.
    #      All dynamic indexing is on the leading (head) axis of the refs. ----
    def head_body(h, carry):
        qh = q_ref[h]                                     # [TQ, hd] bf16
        kh = k_ref[h]                                     # [S,  hd] bf16
        vh = v_ref[h]                                     # [S,  hd] bf16
        s = jax.lax.dot_general(qh, kh, (((1,), (1,)), ((), ())),
                                preferred_element_type=jnp.float32)   # [TQ, S]
        s = s + mbias                                     # key-padding mask
        s = s - jnp.max(s, axis=-1, keepdims=True)        # stable softmax
        p = jnp.exp(s)
        # divide -> EUP reciprocal (frees VALU slots inside the head loop)
        p = p * pl.reciprocal(jnp.sum(p, axis=-1, keepdims=True), approx=True)
        ctx_h_scr[h] = jnp.dot(p.astype(jnp.bfloat16), vh,
                               preferred_element_type=jnp.float32)    # [TQ, hd] f32
        return carry

    jax.lax.fori_loop(0, num_heads, head_body, 0)

    # ---- flatten heads with cheap static copies (f32, cast once at the Wo dot) so the output
    #      projection stays ONE full-contraction (K=H) MXU matmul ----
    for h in range(num_heads):
        ctx_scr[:, h * hd:(h + 1) * hd] = ctx_h_scr[h]

    attn = jnp.dot(ctx_scr[...].astype(jnp.bfloat16), wo_ref[...],
                   preferred_element_type=jnp.float32) + bo_ref[...]

    def ln(y, g, b):
        mu = jnp.mean(y, axis=-1, keepdims=True)
        var = jnp.mean((y - mu) ** 2, axis=-1, keepdims=True)
        return (y - mu) * jax.lax.rsqrt(var + 1e-5) * g + b

    # ---- residual + norm1 ----
    x1 = ln(x + attn, g1_ref[...], be1_ref[...])

    # ---- feed-forward (exact erf-GELU) ----
    h1 = jnp.dot(x1.astype(jnp.bfloat16), w1_ref[...],
                 preferred_element_type=jnp.float32) + b1_ref[...]
    h1 = 0.5 * h1 * (1.0 + jax.lax.erf(h1 * 0.7071067811865476))
    ff = jnp.dot(h1.astype(jnp.bfloat16), w2_ref[...],
                 preferred_element_type=jnp.float32) + b2_ref[...]

    # ---- residual + norm2 ----
    o_ref[...] = ln(x1 + ff, g2_ref[...], be2_ref[...])


# ----------------------------- kernel wrappers ---------------------------------
def qkv_projection(x, wqkv_t, bqkv, tile):
    B, S, H = x.shape
    wkw = _weight_spec_kwargs()
    out = jax.ShapeDtypeStruct((B, S, H), jnp.bfloat16)
    cost = pl.CostEstimate(
        flops=int(6 * B * S * H * H), transcendentals=0,
        bytes_accessed=int(3 * H * H * 2 + B * S * H * 4 + 3 * B * S * H * 2))
    return pl.pallas_call(
        qkv_proj_kernel,
        out_shape=(out, out, out),
        grid=(B, S // tile),
        in_specs=[pl.BlockSpec((None, tile, H), lambda b, t: (b, t, 0)),
                  pl.BlockSpec(wqkv_t.shape, lambda b, t: (0, 0), **wkw),
                  pl.BlockSpec(bqkv.shape, lambda b, t: (0, 0), **wkw)],
        out_specs=(pl.BlockSpec((None, tile, H), lambda b, t: (b, t, 0)),
                   pl.BlockSpec((None, tile, H), lambda b, t: (b, t, 0)),
                   pl.BlockSpec((None, tile, H), lambda b, t: (b, t, 0))),
        compiler_params=pltpu.CompilerParams(
            dimension_semantics=("parallel", "parallel"),
            vmem_limit_bytes=_vmem_limit_bytes()),
        cost_estimate=cost,
    )(x, wqkv_t, bqkv)


def encoder_layer(x, qh, kh, vh, mask_bias, p, num_heads, tq):
    """Attention + FFN half of one nn.TransformerEncoderLayer (QKV already projected)."""
    B, S, H = x.shape
    hd = H // num_heads
    weights = [p["wo_t"], p["bo"], p["w1_t"], p["b1"], p["w2_t"], p["b2"],
               p["g1"], p["be1"], p["g2"], p["be2"]]
    wkw = _weight_spec_kwargs()

    def w_spec(a):
        return pl.BlockSpec(a.shape, lambda b, t, n=a.ndim: (0,) * n, **wkw)

    cost = pl.CostEstimate(
        flops=int(18 * B * S * H * H + 4 * B * S * S * H),
        transcendentals=int(B * num_heads * S * S + 4 * B * S * H + 2 * B * S),
        bytes_accessed=int(9 * H * H * 2 + 8 * H * 4
                           + 2 * B * S * H * 4 + 3 * B * S * H * 2 + B * S * 4))

    # K/V/mask blocks change only with the batch index; default double-buffering is kept for
    # them (single-buffering would stall at batch boundaries), weights are single-buffered.
    return pl.pallas_call(
        functools.partial(attn_ffn_kernel, num_heads=num_heads),
        out_shape=jax.ShapeDtypeStruct((B, S, H), jnp.float32),
        grid=(B, S // tq),
        in_specs=[pl.BlockSpec((None, tq, H), lambda b, t: (b, t, 0)),              # residual
                  pl.BlockSpec((None, num_heads, tq, hd), lambda b, t: (b, 0, t, 0)),  # Q tile
                  pl.BlockSpec((None, num_heads, S, hd), lambda b, t: (b, 0, 0, 0)),   # K (full)
                  pl.BlockSpec((None, num_heads, S, hd), lambda b, t: (b, 0, 0, 0)),   # V (full)
                  pl.BlockSpec((None, 1, S), lambda b, t: (b, 0, 0))]                  # mask
                 + [w_spec(w) for w in weights],
        out_specs=pl.BlockSpec((None, tq, H), lambda b, t: (b, t, 0)),
        scratch_shapes=[pltpu.VMEM((num_heads, tq, hd), jnp.float32),   # per-head context
                        pltpu.VMEM((tq, H), jnp.float32)],              # flattened context
        compiler_params=pltpu.CompilerParams(
            # KV projection hoisted -> no cross-tile carry -> both axes legal to parallelize
            dimension_semantics=("parallel", "parallel"),
            vmem_limit_bytes=_vmem_limit_bytes()),
        cost_estimate=cost,
    )(x, qh, kh, vh, mask_bias, *weights)


# ----------------------------- plain-JAX glue ---------------------------------
def sinusoidal_pe(seq_len, d):
    pos = jnp.arange(seq_len, dtype=jnp.float32)[:, None]
    i = jnp.arange(0, d, 2, dtype=jnp.float32)[None, :]
    div = jnp.exp(-(jnp.log(10000.0)) * i / d)
    pe = jnp.zeros((seq_len, d), jnp.float32)
    pe = pe.at[:, 0::2].set(jnp.sin(pos * div))
    pe = pe.at[:, 1::2].set(jnp.cos(pos * div))
    return pe


def bert_embedding(ids, tok_emb, pos_emb, seg_emb=None, segment_label=None):
    x = jnp.take(tok_emb, ids, axis=0)                 # token emb (padding_idx=0 row is zero)
    x = x + pos_emb[None, :ids.shape[1], :]            # sinusoidal positional emb
    if segment_label is not None and seg_emb is not None:
        x = x + jnp.take(seg_emb, segment_label, axis=0)
    # TODO(synk): embedding dropout omitted (inference mode; p=0.1 only during training).
    return x


def _split_heads(t, num_heads):
    """[B, S, H] -> [B, NH, S, hd] (layout plumbing between the two pallas_calls)."""
    B, S, H = t.shape
    hd = H // num_heads
    return t.reshape(B, S, num_heads, hd).transpose(0, 2, 1, 3)


def init_params(key, vocab_size, hidden, n_layers, num_heads):
    keys = jax.random.split(key, n_layers + 1)
    tok = jax.random.normal(keys[0], (vocab_size, hidden), jnp.float32) * 0.02
    tok = tok.at[0].set(0.0)                           # padding_idx=0
    hd = hidden // num_heads
    scale = 1.0 / (hd ** 0.5)
    # fold 1/sqrt(head_dim) into the Q columns of W_qkv / b_qkv -> no in-kernel scale multiply
    qscale = jnp.concatenate([jnp.full((hidden,), scale, jnp.float32),
                              jnp.ones((2 * hidden,), jnp.float32)])
    layers = []
    s = 0.02
    for l in range(n_layers):
        ks = jax.random.split(keys[l + 1], 4)
        wqkv_t = (jax.random.normal(ks[0], (3 * hidden, hidden), jnp.float32) * s).T  # [H, 3H]
        wqkv_t = wqkv_t * qscale[None, :]
        layers.append(dict(
            # weight matrices in bf16 (MXU-native); biases / LN params stay f32
            wqkv_t=wqkv_t.astype(jnp.bfloat16),
            bqkv=jnp.zeros((1, 3 * hidden), jnp.float32),   # zero, scale-fold is a no-op here
            wo_t=(jax.random.normal(ks[1], (hidden, hidden), jnp.float32) * s).T.astype(jnp.bfloat16),
            bo=jnp.zeros((1, hidden), jnp.float32),
            w1_t=(jax.random.normal(ks[2], (4 * hidden, hidden), jnp.float32) * s).T.astype(jnp.bfloat16),
            b1=jnp.zeros((1, 4 * hidden), jnp.float32),
            w2_t=(jax.random.normal(ks[3], (hidden, 4 * hidden), jnp.float32) * s).T.astype(jnp.bfloat16),
            b2=jnp.zeros((1, hidden), jnp.float32),
            g1=jnp.ones((1, hidden), jnp.float32),
            be1=jnp.zeros((1, hidden), jnp.float32),
            g2=jnp.ones((1, hidden), jnp.float32),
            be2=jnp.zeros((1, hidden), jnp.float32),
        ))
    return tok, layers


def bert_forward(ids, tok_emb, pos_emb, layers, num_heads):
    B, S = ids.shape
    mask_bias = jnp.where(ids == 0, -1e9, 0.0).astype(jnp.float32)[:, None, :]  # [B,1,S]
    x = bert_embedding(ids, tok_emb, pos_emb)
    tq = pick_tile(S)
    # TODO(synk): cross-pallas_call prefetch of layer l+1's weights (P10, v5e DMA hiding) and a
    # bf16 residual stream between layers are not implemented.
    for p in layers:
        q, k, v = qkv_projection(x, p["wqkv_t"], p["bqkv"], tq)
        qh = _split_heads(q, num_heads)
        kh = _split_heads(k, num_heads)
        vh = _split_heads(v, num_heads)
        x = encoder_layer(x, qh, kh, vh, mask_bias, p, num_heads, tq)
    return x


# ----------------------------- JAX references ---------------------------------
def encoder_layer_ref(x, mask_bias, p, num_heads, bf16_matmuls=True):
    B, S, H = x.shape
    hd = H // num_heads
    cdt = jnp.bfloat16 if bf16_matmuls else jnp.float32

    def mm(a, b):
        return jnp.einsum("...ij,jk->...ik", a.astype(cdt), b.astype(cdt),
                          preferred_element_type=jnp.float32)

    qkv = mm(x, p["wqkv_t"]) + p["bqkv"]           # scale already folded into the Q columns
    q, k, v = qkv[..., :H], qkv[..., H:2 * H], qkv[..., 2 * H:]

    def heads(t):
        return t.astype(cdt).reshape(B, S, num_heads, hd).transpose(0, 2, 1, 3)

    qh, kh, vh = heads(q), heads(k), heads(v)
    sc = jnp.einsum("bhqd,bhkd->bhqk", qh, kh, preferred_element_type=jnp.float32)
    sc = sc + mask_bias[:, :, None, :]
    pr = jax.nn.softmax(sc, axis=-1)
    ctx = jnp.einsum("bhqk,bhkd->bhqd", pr.astype(cdt), vh,
                     preferred_element_type=jnp.float32)
    ctx = ctx.transpose(0, 2, 1, 3).reshape(B, S, H)
    attn = mm(ctx, p["wo_t"]) + p["bo"]

    def ln(y, g, b):
        mu = y.mean(-1, keepdims=True)
        var = ((y - mu) ** 2).mean(-1, keepdims=True)
        return (y - mu) * jax.lax.rsqrt(var + 1e-5) * g + b

    x1 = ln(x + attn, p["g1"], p["be1"])
    h1 = mm(x1, p["w1_t"]) + p["b1"]
    h1 = 0.5 * h1 * (1.0 + jax.lax.erf(h1 * 0.7071067811865476))
    ff = mm(h1, p["w2_t"]) + p["b2"]
    return ln(x1 + ff, p["g2"], p["be2"])


def bert_forward_ref(ids, tok_emb, pos_emb, layers, num_heads, bf16_matmuls=True):
    mask_bias = jnp.where(ids == 0, -1e9, 0.0).astype(jnp.float32)[:, None, :]
    x = bert_embedding(ids, tok_emb, pos_emb)
    for p in layers:
        x = encoder_layer_ref(x, mask_bias, p, num_heads, bf16_matmuls)
    return x


# ----------------------------- main -------------------------------------------
if __name__ == "__main__":
    B, S, H, NH, NL, VOCAB = 2, 8, 32, 4, 2, 100

    key = jax.random.PRNGKey(0)
    k_ids, k_params = jax.random.split(key)

    ids = jax.random.randint(k_ids, (B, S), 1, VOCAB).astype(jnp.int32)
    ids = ids.at[:, -1].set(0)  # one padding token per sequence -> exercises src_key_padding_mask

    tok_emb, layers = init_params(k_params, VOCAB, H, NL, NH)
    pos_emb = sinusoidal_pe(512, H)  # module default seq_len=512; sliced to S inside embedding

    out = jax.block_until_ready(bert_forward(ids, tok_emb, pos_emb, layers, NH))
    assert out.shape == (B, S, H)

    # matched mixed-precision reference (bf16 matmul operands, f32 accumulation)
    ref_mixed = bert_forward_ref(ids, tok_emb, pos_emb, layers, NH, bf16_matmuls=True)
    err_mixed = float(jnp.max(jnp.abs(out - ref_mixed)))
    assert jnp.allclose(out, ref_mixed, atol=1e-2, rtol=1e-2), err_mixed

    # looser full-f32 semantic cross-check (same bf16-quantized weight values, f32 compute)
    ref_f32 = bert_forward_ref(ids, tok_emb, pos_emb, layers, NH, bf16_matmuls=False)
    err_f32 = float(jnp.max(jnp.abs(out - ref_f32)))
    assert jnp.allclose(out, ref_f32, atol=5e-2, rtol=5e-2), err_f32

    print("KERNEL_OK")
</pallas_src>

<mosaic_0001>
module attributes {stable_mosaic.version = 11 : i64} {
  func.func @probe_kernel(%arg0: i32, %arg1: memref<8x128xf32, #tpu.memory_space<vmem>>, %arg2: memref<8x128xf32, #tpu.memory_space<vmem>>, %arg3: memref<8x128xf32, #tpu.memory_space<vmem>>) attributes {dimension_semantics = [#tpu.dimension_semantics<arbitrary>], iteration_bounds = array<i64: 2>, scalar_prefetch = 0 : i64, scratch_operands = 0 : i64, tpu.core_type = #tpu.core_type<tc>, window_params = [{pipeline_mode = #tpu.pipeline_mode<synchronous>, transform_indices = @transform_0, window_bounds = array<i64: 8, 128>}, {transform_indices = @transform_1, window_bounds = array<i64: 8, 128>}, {transform_indices = @transform_2, window_bounds = array<i64: 8, 128>}]} {
    %c0 = arith.constant 0 : index
    %c0_0 = arith.constant 0 : index
    %0 = vector.load %arg2[%c0, %c0_0] : memref<8x128xf32, #tpu.memory_space<vmem>>, vector<8x128xf32>
    %c0_1 = arith.constant 0 : index
    %c0_2 = arith.constant 0 : index
    %1 = vector.load %arg1[%c0_1, %c0_2] : memref<8x128xf32, #tpu.memory_space<vmem>>, vector<8x128xf32>
    %2 = arith.addf %0, %1 : vector<8x128xf32>
    %c0_3 = arith.constant 0 : index
    %c0_4 = arith.constant 0 : index
    %3 = vector.load %arg3[%c0_3, %c0_4] : memref<8x128xf32, #tpu.memory_space<vmem>>, vector<8x128xf32>
    tpu.vector_store %arg3[%c0_3, %c0_4], %2 {strides = array<i32>} : memref<8x128xf32, #tpu.memory_space<vmem>>, vector<8x128xf32>,
    return
  }
  func.func @transform_0(%arg0: i32) -> (i32, i32) {
    %c0_i32 = arith.constant 0 : i32
    %c0_i32_0 = arith.constant 0 : i32
    %c0_i32_1 = arith.constant 0 : i32
    return %c0_i32, %c0_i32_0 : i32, i32
  }
  func.func @transform_1(%arg0: i32) -> (i32, i32) {
    %c0_i32 = arith.constant 0 : i32
    %c0_i32_0 = arith.constant 0 : i32
    return %arg0, %c0_i32 : i32, i32
  }
  func.func @transform_2(%arg0: i32) -> (i32, i32) {
    %c0_i32 = arith.constant 0 : i32
    %c0_i32_0 = arith.constant 0 : i32
    return %arg0, %c0_i32 : i32, i32
  }
}

module attributes {stable_mosaic.version = 11 : i64} {
  func.func @qkv_proj_kernel(%arg0: i32, %arg1: i32, %arg2: memref<1x8x32xf32, #tpu.memory_space<vmem>>, %arg3: memref<32x96xbf16, #tpu.memory_space<vmem>>, %arg4: memref<1x96xf32, #tpu.memory_space<vmem>>, %arg5: memref<1x8x32xbf16, #tpu.memory_space<vmem>>, %arg6: memref<1x8x32xbf16, #tpu.memory_space<vmem>>, %arg7: memref<1x8x32xbf16, #tpu.memory_space<vmem>>) attributes {dimension_semantics = [#tpu.dimension_semantics<parallel>, #tpu.dimension_semantics<parallel>], iteration_bounds = array<i64: 2, 1>, scalar_prefetch = 0 : i64, scratch_operands = 0 : i64, tpu.core_type = #tpu.core_type<tc>, window_params = [{transform_indices = @transform_0, window_bounds = array<i64: 1, 8, 32>}, {pipeline_mode = #tpu.pipeline_mode<synchronous>, transform_indices = @transform_1, window_bounds = array<i64: 32, 96>}, {pipeline_mode = #tpu.pipeline_mode<synchronous>, transform_indices = @transform_2, window_bounds = array<i64: 1, 96>}, {transform_indices = @transform_3, window_bounds = array<i64: 1, 8, 32>}, {transform_indices = @transform_4, window_bounds = array<i64: 1, 8, 32>}, {transform_indices = @transform_5, window_bounds = array<i64: 1, 8, 32>}]} {
    %c0 = arith.constant 0 : index
    %c0_0 = arith.constant 0 : index
    %c0_1 = arith.constant 0 : index
    %0 = vector.load %arg2[%c0, %c0_0, %c0_1] : memref<1x8x32xf32, #tpu.memory_space<vmem>>, vector<1x8x32xf32>
    %1 = vector.shape_cast %0 : vector<1x8x32xf32> to vector<8x32xf32>
    %2 = arith.truncf %1 : vector<8x32xf32> to vector<8x32xbf16>
    %c0_2 = arith.constant 0 : index
    %c0_3 = arith.constant 0 : index
    %3 = vector.load %arg3[%c0_2, %c0_3] : memref<32x96xbf16, #tpu.memory_space<vmem>>, vector<32x96xbf16>
    %cst = arith.constant dense<0.000000e+00> : vector<8x96xf32>
    %4 = tpu.matmul %2, %3, %cst {dimension_numbers = #tpu.dot_dimension_numbers<[1], [0], [0], [1], [0, 0, 1, 1], [], []>} : vector<8x32xbf16>, vector<32x96xbf16>, vector<8x96xf32> -> vector<8x96xf32>
    %c0_4 = arith.constant 0 : index
    %c0_5 = arith.constant 0 : index
    %5 = vector.load %arg4[%c0_4, %c0_5] : memref<1x96xf32, #tpu.memory_space<vmem>>, vector<1x96xf32>
    %6 = vector.broadcast %5 : vector<1x96xf32> to vector<8x96xf32>
    %7 = arith.addf %4, %6 : vector<8x96xf32>
    %8 = arith.truncf %7 : vector<8x96xf32> to vector<8x96xbf16>
    %9 = vector.extract_strided_slice %8 {offsets = [0, 0], sizes = [8, 32], strides = [1, 1]} : vector<8x96xbf16> to vector<8x32xbf16>
    %c0_6 = arith.constant 0 : index
    %c0_7 = arith.constant 0 : index
    %c0_8 = arith.constant 0 : index
    %10 = vector.load %arg5[%c0_6, %c0_7, %c0_8] : memref<1x8x32xbf16, #tpu.memory_space<vmem>>, vector<1x8x32xbf16>
    %11 = vector.shape_cast %10 : vector<1x8x32xbf16> to vector<8x32xbf16>
    %12 = vector.shape_cast %9 : vector<8x32xbf16> to vector<1x8x32xbf16>
    tpu.vector_store %arg5[%c0_6, %c0_7, %c0_8], %12 {strides = array<i32>} : memref<1x8x32xbf16, #tpu.memory_space<vmem>>, vector<1x8x32xbf16>,
    %13 = vector.extract_strided_slice %8 {offsets = [0, 32], sizes = [8, 32], strides = [1, 1]} : vector<8x96xbf16> to vector<8x32xbf16>
    %c0_9 = arith.constant 0 : index
    %c0_10 = arith.constant 0 : index
    %c0_11 = arith.constant 0 : index
    %14 = vector.load %arg6[%c0_9, %c0_10, %c0_11] : memref<1x8x32xbf16, #tpu.memory_space<vmem>>, vector<1x8x32xbf16>
    %15 = vector.shape_cast %14 : vector<1x8x32xbf16> to vector<8x32xbf16>
    %16 = vector.shape_cast %13 : vector<8x32xbf16> to vector<1x8x32xbf16>
    tpu.vector_store %arg6[%c0_9, %c0_10, %c0_11], %16 {strides = array<i32>} : memref<1x8x32xbf16, #tpu.memory_space<vmem>>, vector<1x8x32xbf16>,
    %17 = vector.extract_strided_slice %8 {offsets = [0, 64], sizes = [8, 32], strides = [1, 1]} : vector<8x96xbf16> to vector<8x32xbf16>
    %c0_12 = arith.constant 0 : index
    %c0_13 = arith.constant 0 : index
    %c0_14 = arith.constant 0 : index
    %18 = vector.load %arg7[%c0_12, %c0_13, %c0_14] : memref<1x8x32xbf16, #tpu.memory_space<vmem>>, vector<1x8x32xbf16>
    %19 = vector.shape_cast %18 : vector<1x8x32xbf16> to vector<8x32xbf16>
    %20 = vector.shape_cast %17 : vector<8x32xbf16> to vector<1x8x32xbf16>
    tpu.vector_store %arg7[%c0_12, %c0_13, %c0_14], %20 {strides = array<i32>} : memref<1x8x32xbf16, #tpu.memory_space<vmem>>, vector<1x8x32xbf16>,
    return
  }
  func.func @transform_0(%arg0: i32, %arg1: i32) -> (i32, i32, i32) {
    %c0_i32 = arith.constant 0 : i32
    %c0_i32_0 = arith.constant 0 : i32
    return %arg0, %arg1, %c0_i32 : i32, i32, i32
  }
  func.func @transform_1(%arg0: i32, %arg1: i32) -> (i32, i32) {
    %c0_i32 = arith.constant 0 : i32
    %c0_i32_0 = arith.constant 0 : i32
    %c0_i32_1 = arith.constant 0 : i32
    return %c0_i32, %c0_i32_0 : i32, i32
  }
  func.func @transform_2(%arg0: i32, %arg1: i32) -> (i32, i32) {
    %c0_i32 = arith.constant 0 : i32
    %c0_i32_0 = arith.constant 0 : i32
    %c0_i32_1 = arith.constant 0 : i32
    return %c0_i32, %c0_i32_0 : i32, i32
  }
  func.func @transform_3(%arg0: i32, %arg1: i32) -> (i32, i32, i32) {
    %c0_i32 = arith.constant 0 : i32
    %c0_i32_0 = arith.constant 0 : i32
    return %arg0, %arg1, %c0_i32 : i32, i32, i32
  }
  func.func @transform_4(%arg0: i32, %arg1: i32) -> (i32, i32, i32) {
    %c0_i32 = arith.constant 0 : i32
    %c0_i32_0 = arith.constant 0 : i32
    return %arg0, %arg1, %c0_i32 : i32, i32, i32
  }
  func.func @transform_5(%arg0: i32, %arg1: i32) -> (i32, i32, i32) {
    %c0_i32 = arith.constant 0 : i32
    %c0_i32_0 = arith.constant 0 : i32
    return %arg0, %arg1, %c0_i32 : i32, i32, i32
  }
}

</mosaic_0001>

<llo_original>
// kernel: tpu_custom_call.1
$region0: #{tpu_custom_call.1}
  #allocation0 [shape = 'u32[]', space=smem, size = 0x4, offset = 0x4, fixed_abs, tag = 'smem constant byte address 0x4 - core index']
  #allocation1 [shape = 'u32[144,128]{1,0:T(1,128)}', space=vmem, size = 0x12000, scoped, tag = 'internal scratch']
  %s0 = inlined_call_operand.hbm [shape: f32[8,128], index: 0, kind: input, shape index: {}]
  %s1 = inlined_call_operand.hbm [shape: f32[16,128], index: 1, kind: input, shape index: {}]
  %s2 = inlined_call_operand.hbm [shape: f32[16,128], index: 2, kind: output, shape index: {}]
  %s3 = sld [smem:[#allocation0]]
  $region49: #{tpu_custom_call.1} parent=0
    _
  %s5 = ssub.s32 1, %s3
  %s6 = scalar_select 0, %s5, %s3
  $region1: #{tpu_custom_call.1} parent=0
    #allocation2 [shape = 'u8[4096]{0}', space=vmem, size = 0x1000, scoped, tag = 'input window, operand 0, single buffered']
    #allocation3 [shape = 's32[2]{0}', space=sflag, size = 0x8, scoped, tag = 'scoped memory for tpu_custom_call.1']
    #allocation4 [shape = 's32[2]{0}', space=sflag, size = 0x8, scoped, tag = 'scoped memory for tpu_custom_call.1']
    #allocation5 [shape = 'u8[8192]{0}', space=vmem, size = 0x2000, scoped, tag = 'input window, operand 1']
    #allocation6 [shape = 's32[2]{0}', space=sflag, size = 0x8, scoped, tag = 'scoped memory for tpu_custom_call.1']
    #allocation7 [shape = 'u8[8192]{0}', space=vmem, size = 0x2000, scoped, tag = 'output window, operand 0']
    %7 = vsyncpa [#allocation3], 0
    %8 = vsyncpa [#allocation6], 0
    %s9 = scalar_lea.sflag [#allocation6], 1
    %10 = vsyncpa %s9, 0
    %11 = vsyncpa [#allocation4], 0
    %s12 = scalar_lea.sflag [#allocation4], 1
    %13 = vsyncpa %s12, 0
    loop: start=0, step=1, limit=4
    $region2: #{tpu_custom_call.1} parent=1 // loop_pre_header
      _
    $region3: #{tpu_custom_call.1} parent=1 // loop_header
      %s15 = sphi 0, %s19
      %p16 = scmp.ge.s32.totalorder %s15, 4
      %s23 = sphi 0, %s23
      %s25 = sphi 0, %s23
      %s26 = sphi 0, %s25
      %s40 = sphi 0, %s26
      %s46 = sphi 0, %s48
      %s49 = sphi 0, %s46
      %s50 = sphi 0, %s49
      %s66 = sphi 0, %s50
      %s72 = sphi 0, %s74
      %s75 = sphi 0, %s72
      %s76 = sphi 0, %s75
      %s92 = sphi 0, %s76
    $region4: #{tpu_custom_call.1} parent=1 // loop_header_branch
      %18 = sbr.rel (%p16) target = $region8
    $region5: #{tpu_custom_call.1} parent=1 // loop_body
      %s20 = ssub.s32 %s15, 1
      %s21 = ssub.s32 %s15, 2
      %s22 = sadd.s32 %s15, 1
      %s24 = sadd.s32 %s23, 1
      %p27 = scmp.eq.s32.totalorder %s15, 1
      %p28 = scmp.ne.s32.totalorder %s23, %s25
      %p29 = scmp.eq.s32.totalorder %s15, 0
      %p30 = por %p28, %p29
      %p31 = scmp.ne.s32.totalorder %s23, %s25
      %p32 = scmp.eq.s32.totalorder %s20, 1
      %p33 = por %p31, %p32
      %p34 = scmp.ne.s32.totalorder %s25, %s26
      %p35 = scmp.eq.s32.totalorder %s20, 0
      %p36 = por %p34, %p35
      %p37 = scmp.ne.s32.totalorder %s25, %s26
      %p38 = scmp.eq.s32.totalorder %s21, 1
      %p39 = por %p37, %p38
      %p41 = scmp.ne.s32.totalorder %s26, %s40
      %p42 = scmp.eq.s32.totalorder %s21, 0
      %p43 = por %p41, %p42
      %s44 = ssub.s32 %s15, %s22
      %p45 = scmp.eq.s32.totalorder %s44, 0
      %s47 = sadd.s32 %s46, 1
      %s48 = scalar_select %p45, %s46, %s47
      %p51 = pneg %p45
      %p52 = scmp.eq.s32.totalorder %s15, 1
      %p53 = por %p51, %p52
      %p54 = scmp.ne.s32.totalorder %s46, %s49
      %p55 = scmp.eq.s32.totalorder %s15, 0
      %p56 = por %p54, %p55
      %p57 = scmp.ne.s32.totalorder %s46, %s49
      %p58 = scmp.eq.s32.totalorder %s20, 1
      %p59 = por %p57, %p58
      %p60 = scmp.ne.s32.totalorder %s49, %s50
      %p61 = scmp.eq.s32.totalorder %s20, 0
      %p62 = por %p60, %p61
      %p63 = scmp.ne.s32.totalorder %s49, %s50
      %p64 = scmp.eq.s32.totalorder %s21, 1
      %p65 = por %p63, %p64
      %p67 = scmp.ne.s32.totalorder %s50, %s66
      %p68 = scmp.eq.s32.totalorder %s21, 0
      %p69 = por %p67, %p68
      %s70 = ssub.s32 %s15, %s22
      %p71 = scmp.eq.s32.totalorder %s70, 0
      %s73 = sadd.s32 %s72, 1
      %s74 = scalar_select %p71, %s72, %s73
      %p77 = pneg %p71
      %p78 = scmp.eq.s32.totalorder %s15, 1
      %p79 = por %p77, %p78
      %p80 = scmp.ne.s32.totalorder %s72, %s75
      %p81 = scmp.eq.s32.totalorder %s15, 0
      %p82 = por %p80, %p81
      %p83 = scmp.ne.s32.totalorder %s72, %s75
      %p84 = scmp.eq.s32.totalorder %s20, 1
      %p85 = por %p83, %p84
      %p86 = scmp.ne.s32.totalorder %s75, %s76
      %p87 = scmp.eq.s32.totalorder %s20, 0
      %p88 = por %p86, %p87
      %p89 = scmp.ne.s32.totalorder %s75, %s76
      %p90 = scmp.eq.s32.totalorder %s21, 1
      %p91 = por %p89, %p90
      %p93 = scmp.ne.s32.totalorder %s76, %s92
      %p94 = scmp.eq.s32.totalorder %s21, 0
      %p95 = por %p93, %p94
      %p96 = scmp.le.s32.totalorder 1, %s15
      %p97 = scmp.lt.s32.totalorder %s15, 3
      %p98 = pnand %p96, %p97
      %p99 = pneg %p98
      // Predicated region
      $region9: #{tpu_custom_call.1} parent=5 // pred_check
        _
      $region10: #{tpu_custom_call.1} parent=5 // pred_check_branch
        %101 = sbr.rel (%p98) target = $region12
      $region11: #{tpu_custom_call.1} parent=5 // pred_region
        %s102 = ssub.s32 %s15, 1
        // Predicated region
        $region13: #{tpu_custom_call.1} parent=11 // pred_check
          %p103 = pneg %p36
        $region14: #{tpu_custom_call.1} parent=11 // pred_check_branch
          %105 = sbr.rel (%p103) target = $region16
        $region15: #{tpu_custom_call.1} parent=11 // pred_region
          %s107 = ssub.s32 128, 128
          %108 = vsyncadd [#allocation3], %s107
          %s110 = sshll.u32 [#allocation2], 4
          %s111 = int_to_ptr.vmem [resolvable:$true] %s110
          %113 = dma.hbm_to_vmem [thread:$0]  %s0, 128, %s111, [#allocation3]
        $region16: #{tpu_custom_call.1} parent=11 // pred_fallthru
          _
      $region12: #{tpu_custom_call.1} parent=5 // pred_fallthru
        _
      %p114 = scmp.lt.s32.totalorder %s15, 2
      // Predicated region
      $region17: #{tpu_custom_call.1} parent=5 // pred_check
        %p115 = pneg %p114
      $region18: #{tpu_custom_call.1} parent=5 // pred_check_branch
        %117 = sbr.rel (%p115) target = $region20
      $region19: #{tpu_custom_call.1} parent=5 // pred_region
        // Predicated region
        $region21: #{tpu_custom_call.1} parent=19 // pred_check
          %p118 = pneg %p56
        $region22: #{tpu_custom_call.1} parent=19 // pred_check_branch
          %120 = sbr.rel (%p118) target = $region24
        $region23: #{tpu_custom_call.1} parent=19 // pred_region
          %s121 = sand.u32 %s46, 1
          %s122 = scalar_lea.sflag [#allocation6], %s121
          %s123 = sand.u32 %s46, 1
          %s124 = smul.addr %s123, 8
          %s125 = scalar_lea.vmem [#allocation5], %s124
          %s127 = ssub.s32 128, 128
          %128 = vsyncadd %s122, %s127
          %s129 = smul.addr %s15, 128
          %s130 = scalar_lea.hbm %s1, %s129
          %s132 = sshll.u32 %s125, 4
          %s133 = int_to_ptr.vmem [resolvable:$true] %s132
          %135 = dma.hbm_to_vmem [thread:$0]  %s130, 128, %s133, %s122
        $region24: #{tpu_custom_call.1} parent=19 // pred_fallthru
          _
      $region20: #{tpu_custom_call.1} parent=5 // pred_fallthru
        _
      %p136 = scmp.le.s32.totalorder 1, %s15
      %p137 = scmp.lt.s32.totalorder %s15, 3
      %p138 = pnand %p136, %p137
      %p139 = pneg %p138
      // Predicated region
      $region25: #{tpu_custom_call.1} parent=5 // pred_check
        _
      $region26: #{tpu_custom_call.1} parent=5 // pred_check_branch
        %141 = sbr.rel (%p138) target = $region28
      $region27: #{tpu_custom_call.1} parent=5 // pred_region
        %s142 = ssub.s32 %s15, 1
        // Predicated region
        $region29: #{tpu_custom_call.1} parent=27 // pred_check
          %p143 = pneg %p36
        $region30: #{tpu_custom_call.1} parent=27 // pred_check_branch
          %145 = sbr.rel (%p143) target = $region32
        $region31: #{tpu_custom_call.1} parent=27 // pred_region
          %146 = dma.done [#allocation3], 128
        $region32: #{tpu_custom_call.1} parent=27 // pred_fallthru
          _
        %s147 = sand.u32 %s49, 1
        %s148 = scalar_lea.sflag [#allocation6], %s147
        %s149 = sand.u32 %s49, 1
        %s150 = smul.addr %s149, 8
        %s151 = scalar_lea.vmem [#allocation5], %s150
        // Predicated region
        $region33: #{tpu_custom_call.1} parent=27 // pred_check
          %p152 = pneg %p62
        $region34: #{tpu_custom_call.1} parent=27 // pred_check_branch
          %154 = sbr.rel (%p152) target = $region36
        $region35: #{tpu_custom_call.1} parent=27 // pred_region
          %155 = dma.done %s148, 128
        $region36: #{tpu_custom_call.1} parent=27 // pred_fallthru
          _
        %p156 = pneg %p36
        %p157 = pneg %p33
        %s158 = sand.u32 %s49, 1
        %s159 = scalar_lea.sflag [#allocation6], %s158
        %s160 = sand.u32 %s49, 1
        %s161 = smul.addr %s160, 8
        %s162 = scalar_lea.vmem [#allocation5], %s161
        %p163 = pneg %p62
        %p164 = pneg %p59
        %p165 = pneg %p88
        %p166 = pneg %p85
        %s167 = sand.u32 %s75, 1
        %s168 = scalar_lea.sflag [#allocation4], %s167
        %s169 = sand.u32 %s75, 1
        %s170 = smul.addr %s169, 8
        %s171 = scalar_lea.vmem [#allocation7], %s170
        %v172 = vld [vmem:[%s151] sm:$0xff]
        %v173 = vld [vmem:[#allocation2] sm:$0xff]
        %v174 = vadd.f32 %v172, %v173
        %175 = vst [vmem:[%s171] sm:$0xff] %v174
        %s176 = sand.u32 %s75, 1
        %s177 = scalar_lea.sflag [#allocation4], %s176
        %s178 = sand.u32 %s75, 1
        %s179 = smul.addr %s178, 8
        %s180 = scalar_lea.vmem [#allocation7], %s179
        // Predicated region
        $region37: #{tpu_custom_call.1} parent=27 // pred_check
          %p181 = pneg %p85
        $region38: #{tpu_custom_call.1} parent=27 // pred_check_branch
          %183 = sbr.rel (%p181) target = $region40
        $region39: #{tpu_custom_call.1} parent=27 // pred_region
          %s185 = ssub.s32 128, 128
          %186 = vsyncadd %s177, %s185
          %s187 = smul.addr %s20, 128
          %s188 = scalar_lea.hbm %s2, %s187
          %s190 = sshll.u32 %s180, 4
          %s191 = int_to_ptr.vmem [resolvable:$true] %s190
          %193 = dma.vmem_to_hbm [thread:$0]  %s191, 128, %s188, %s177
        $region40: #{tpu_custom_call.1} parent=27 // pred_fallthru
          _
      $region28: #{tpu_custom_call.1} parent=5 // pred_fallthru
        _
      %p194 = scmp.le.s32.totalorder 2, %s15
      // Predicated region
      $region41: #{tpu_custom_call.1} parent=5 // pred_check
        %p195 = pneg %p194
      $region42: #{tpu_custom_call.1} parent=5 // pred_check_branch
        %197 = sbr.rel (%p195) target = $region44
      $region43: #{tpu_custom_call.1} parent=5 // pred_region
        %s198 = ssub.s32 %s15, 2
        // Predicated region
        $region45: #{tpu_custom_call.1} parent=43 // pred_check
          %p199 = pneg %p91
        $region46: #{tpu_custom_call.1} parent=43 // pred_check_branch
          %201 = sbr.rel (%p199) target = $region48
        $region47: #{tpu_custom_call.1} parent=43 // pred_region
          %s202 = sand.u32 %s76, 1
          %s203 = scalar_lea.sflag [#allocation4], %s202
          %s204 = sand.u32 %s76, 1
          %s205 = smul.addr %s204, 8
          %s206 = scalar_lea.vmem [#allocation7], %s205
          %207 = dma.done %s203, 128
        $region48: #{tpu_custom_call.1} parent=43 // pred_fallthru
          _
      $region44: #{tpu_custom_call.1} parent=5 // pred_fallthru
        _
    $region6: #{tpu_custom_call.1} parent=1 // loop_footer
      %s19 = sadd.s32 1, %s15
    $region7: #{tpu_custom_call.1} parent=1 // loop_footer_branch
      %14 = sbr.rel target = $region3
    $region8: #{tpu_custom_call.1} parent=1 // loop_exit
      _
    %208 = vsyncpa [#allocation3], 1
    %s209 = scalar_lea.sflag [#allocation3], 1
    %210 = vsyncpa %s209, 1
    %211 = vsyncpa [#allocation6], 1
    %s212 = scalar_lea.sflag [#allocation6], 1
    %213 = vsyncpa %s212, 1
    %214 = vsyncpa [#allocation4], 1
    %s215 = scalar_lea.sflag [#allocation4], 1
    %216 = vsyncpa %s215, 1

// kernel: tpu_custom_call.1
$region0: #{tpu_custom_call.1}
  #allocation0 [shape = 'u32[]', space=smem, size = 0x4, offset = 0x4, fixed_abs, tag = 'smem constant byte address 0x4 - core index']
  #allocation1 [shape = 'u32[144,128]{1,0:T(1,128)}', space=vmem, size = 0x12000, scoped, tag = 'internal scratch']
  %s0 = inlined_call_operand.hbm [shape: f32[2,8,32], index: 0, kind: input, shape index: {}]
  %s1 = inlined_call_operand.hbm [shape: bf16[32,96], index: 1, kind: input, shape index: {}]
  %s2 = inlined_call_operand.hbm [shape: f32[1,96], index: 2, kind: input, shape index: {}]
  %s3 = inlined_call_operand.hbm [shape: bf16[2,8,32], index: 3, kind: output, shape index: {0}]
  %s4 = inlined_call_operand.hbm [shape: bf16[2,8,32], index: 4, kind: output, shape index: {1}]
  %s5 = inlined_call_operand.hbm [shape: bf16[2,8,32], index: 5, kind: output, shape index: {2}]
  %6 = xla_tuple %s3, %s4, %s5
  %s7 = sld [smem:[#allocation0]]
  $region73: #{tpu_custom_call.1} parent=0
    _
  %s9 = ssub.s32 1, %s7
  %s10 = scalar_select 0, %s9, %s7
  $region1: #{tpu_custom_call.1} parent=0
    #allocation2 [shape = 'u8[8192]{0}', space=vmem, size = 0x2000, scoped, tag = 'input window, operand 0']
    #allocation3 [shape = 's32[2]{0}', space=sflag, size = 0x8, scoped, tag = 'scoped memory for tpu_custom_call.1']
    #allocation4 [shape = 's32[2]{0}', space=sflag, size = 0x8, scoped, tag = 'scoped memory for tpu_custom_call.1']
    #allocation5 [shape = 'u8[8192]{0}', space=vmem, size = 0x2000, scoped, tag = 'input window, operand 1, single buffered']
    #allocation6 [shape = 's32[1]{0}', space=sflag, size = 0x4, scoped, tag = 'scoped memory for tpu_custom_call.1']
    #allocation7 [shape = 'u8[512]{0}', space=vmem, size = 0x400, scoped, tag = 'input window, operand 2, single buffered']
    #allocation8 [shape = 'u8[4096]{0}', space=vmem, size = 0x1000, scoped, tag = 'output window, operand 0']
    #allocation9 [shape = 'u8[4096]{0}', space=vmem, size = 0x1000, scoped, tag = 'output window, operand 1']
    #allocation10 [shape = 's32[2]{0}', space=sflag, size = 0x8, scoped, tag = 'scoped memory for tpu_custom_call.1']
    #allocation11 [shape = 'u8[4096]{0}', space=vmem, size = 0x1000, scoped, tag = 'output window, operand 2']
    %11 = vsyncpa [#allocation3], 0
    %s12 = scalar_lea.sflag [#allocation3], 1
    %13 = vsyncpa %s12, 0
    %14 = vsyncpa [#allocation6], 0
    %15 = vsyncpa [#allocation4], 0
    %s16 = scalar_lea.sflag [#allocation4], 1
    %17 = vsyncpa %s16, 0
    %18 = vsyncpa [#allocation10], 0
    %s19 = scalar_lea.sflag [#allocation10], 1
    %20 = vsyncpa %s19, 0
    loop: start=0, step=1, limit=4
    $region2: #{tpu_custom_call.1} parent=1 // loop_pre_header
      _
    $region3: #{tpu_custom_call.1} parent=1 // loop_header
      %s22 = sphi 0, %s26
      %p23 = scmp.ge.s32.totalorder %s22, 4
      %s29 = sphi 0, %s41
      %s30 = sphi 0, %s37
      %s31 = sphi 0, %s29
      %s32 = sphi 0, %s30
      %s33 = sphi 0, %s31
      %s34 = sphi 0, %s32
      %s46 = sphi 0, %s48
      %s49 = sphi 0, %s46
      %s50 = sphi 0, %s49
      %s66 = sphi 0, %s50
      %s70 = sphi 0, %s70
      %s72 = sphi 0, %s70
      %s73 = sphi 0, %s72
      %s87 = sphi 0, %s73
      %s91 = sphi 0, %s91
      %s93 = sphi 0, %s91
      %s94 = sphi 0, %s93
      %s108 = sphi 0, %s94
      %s116 = sphi 0, %s118
      %s119 = sphi 0, %s116
      %s120 = sphi 0, %s119
      %s136 = sphi 0, %s120
      %s144 = sphi 0, %s146
      %s147 = sphi 0, %s144
      %s148 = sphi 0, %s147
      %s164 = sphi 0, %s148
      %s172 = sphi 0, %s174
      %s175 = sphi 0, %s172
      %s176 = sphi 0, %s175
      %s192 = sphi 0, %s176
    $region4: #{tpu_custom_call.1} parent=1 // loop_header_branch
      %25 = sbr.rel (%p23) target = $region8
    $region5: #{tpu_custom_call.1} parent=1 // loop_body
      %s27 = ssub.s32 %s22, 1
      %s28 = ssub.s32 %s22, 2
      %s35 = sadd.s32 1, %s30
      %p36 = scmp.ge.s32.totalorder %s35, 1
      %s37 = scalar_select %p36, 0, %s35
      %s38 = sadd.s32 1, %s29
      %s39 = scalar_select %p36, %s38, %s29
      %p40 = scmp.ge.s32.totalorder %s39, 2
      %s41 = scalar_select %p40, 0, %s39
      %s42 = ssub.s32 %s29, %s41
      %s43 = ssub.s32 %s30, %s37
      %s44 = sor.u32 %s42, %s43
      %p45 = scmp.eq.s32.totalorder %s44, 0
      %s47 = sadd.s32 %s46, 1
      %s48 = scalar_select %p45, %s46, %s47
      %p51 = pneg %p45
      %p52 = scmp.eq.s32.totalorder %s22, 1
      %p53 = por %p51, %p52
      %p54 = scmp.ne.s32.totalorder %s46, %s49
      %p55 = scmp.eq.s32.totalorder %s22, 0
      %p56 = por %p54, %p55
      %p57 = scmp.ne.s32.totalorder %s46, %s49
      %p58 = scmp.eq.s32.totalorder %s27, 1
      %p59 = por %p57, %p58
      %p60 = scmp.ne.s32.totalorder %s49, %s50
      %p61 = scmp.eq.s32.totalorder %s27, 0
      %p62 = por %p60, %p61
      %p63 = scmp.ne.s32.totalorder %s49, %s50
      %p64 = scmp.eq.s32.totalorder %s28, 1
      %p65 = por %p63, %p64
      %p67 = scmp.ne.s32.totalorder %s50, %s66
      %p68 = scmp.eq.s32.totalorder %s28, 0
      %p69 = por %p67, %p68
      %s71 = sadd.s32 %s70, 1
      %p74 = scmp.eq.s32.totalorder %s22, 1
      %p75 = scmp.ne.s32.totalorder %s70, %s72
      %p76 = scmp.eq.s32.totalorder %s22, 0
      %p77 = por %p75, %p76
      %p78 = scmp.ne.s32.totalorder %s70, %s72
      %p79 = scmp.eq.s32.totalorder %s27, 1
      %p80 = por %p78, %p79
      %p81 = scmp.ne.s32.totalorder %s72, %s73
      %p82 = scmp.eq.s32.totalorder %s27, 0
      %p83 = por %p81, %p82
      %p84 = scmp.ne.s32.totalorder %s72, %s73
      %p85 = scmp.eq.s32.totalorder %s28, 1
      %p86 = por %p84, %p85
      %p88 = scmp.ne.s32.totalorder %s73, %s87
      %p89 = scmp.eq.s32.totalorder %s28, 0
      %p90 = por %p88, %p89
      %s92 = sadd.s32 %s91, 1
      %p95 = scmp.eq.s32.totalorder %s22, 1
      %p96 = scmp.ne.s32.totalorder %s91, %s93
      %p97 = scmp.eq.s32.totalorder %s22, 0
      %p98 = por %p96, %p97
      %p99 = scmp.ne.s32.totalorder %s91, %s93
      %p100 = scmp.eq.s32.totalorder %s27, 1
      %p101 = por %p99, %p100
      %p102 = scmp.ne.s32.totalorder %s93, %s94
      %p103 = scmp.eq.s32.totalorder %s27, 0
      %p104 = por %p102, %p103
      %p105 = scmp.ne.s32.totalorder %s93, %s94
      %p106 = scmp.eq.s32.totalorder %s28, 1
      %p107 = por %p105, %p106
      %p109 = scmp.ne.s32.totalorder %s94, %s108
      %p110 = scmp.eq.s32.totalorder %s28, 0
      %p111 = por %p109, %p110
      %s112 = ssub.s32 %s29, %s41
      %s113 = ssub.s32 %s30, %s37
      %s114 = sor.u32 %s112, %s113
      %p115 = scmp.eq.s32.totalorder %s114, 0
      %s117 = sadd.s32 %s116, 1
      %s118 = scalar_select %p115, %s116, %s117
      %p121 = pneg %p115
      %p122 = scmp.eq.s32.totalorder %s22, 1
      %p123 = por %p121, %p122
      %p124 = scmp.ne.s32.totalorder %s116, %s119
      %p125 = scmp.eq.s32.totalorder %s22, 0
      %p126 = por %p124, %p125
      %p127 = scmp.ne.s32.totalorder %s116, %s119
      %p128 = scmp.eq.s32.totalorder %s27, 1
      %p129 = por %p127, %p128
      %p130 = scmp.ne.s32.totalorder %s119, %s120
      %p131 = scmp.eq.s32.totalorder %s27, 0
      %p132 = por %p130, %p131
      %p133 = scmp.ne.s32.totalorder %s119, %s120
      %p134 = scmp.eq.s32.totalorder %s28, 1
      %p135 = por %p133, %p134
      %p137 = scmp.ne.s32.totalorder %s120, %s136
      %p138 = scmp.eq.s32.totalorder %s28, 0
      %p139 = por %p137, %p138
      %s140 = ssub.s32 %s29, %s41
      %s141 = ssub.s32 %s30, %s37
      %s142 = sor.u32 %s140, %s141
      %p143 = scmp.eq.s32.totalorder %s142, 0
      %s145 = sadd.s32 %s144, 1
      %s146 = scalar_select %p143, %s144, %s145
      %p149 = pneg %p143
      %p150 = scmp.eq.s32.totalorder %s22, 1
      %p151 = por %p149, %p150
      %p152 = scmp.ne.s32.totalorder %s144, %s147
      %p153 = scmp.eq.s32.totalorder %s22, 0
      %p154 = por %p152, %p153
      %p155 = scmp.ne.s32.totalorder %s144, %s147
      %p156 = scmp.eq.s32.totalorder %s27, 1
      %p157 = por %p155, %p156
      %p158 = scmp.ne.s32.totalorder %s147, %s148
      %p159 = scmp.eq.s32.totalorder %s27, 0
      %p160 = por %p158, %p159
      %p161 = scmp.ne.s32.totalorder %s147, %s148
      %p162 = scmp.eq.s32.totalorder %s28, 1
      %p163 = por %p161, %p162
      %p165 = scmp.ne.s32.totalorder %s148, %s164
      %p166 = scmp.eq.s32.totalorder %s28, 0
      %p167 = por %p165, %p166
      %s168 = ssub.s32 %s29, %s41
      %s169 = ssub.s32 %s30, %s37
      %s170 = sor.u32 %s168, %s169
      %p171 = scmp.eq.s32.totalorder %s170, 0
      %s173 = sadd.s32 %s172, 1
      %s174 = scalar_select %p171, %s172, %s173
      %p177 = pneg %p171
      %p178 = scmp.eq.s32.totalorder %s22, 1
      %p179 = por %p177, %p178
      %p180 = scmp.ne.s32.totalorder %s172, %s175
      %p181 = scmp.eq.s32.totalorder %s22, 0
      %p182 = por %p180, %p181
      %p183 = scmp.ne.s32.totalorder %s172, %s175
      %p184 = scmp.eq.s32.totalorder %s27, 1
      %p185 = por %p183, %p184
      %p186 = scmp.ne.s32.totalorder %s175, %s176
      %p187 = scmp.eq.s32.totalorder %s27, 0
      %p188 = por %p186, %p187
      %p189 = scmp.ne.s32.totalorder %s175, %s176
      %p190 = scmp.eq.s32.totalorder %s28, 1
      %p191 = por %p189, %p190
      %p193 = scmp.ne.s32.totalorder %s176, %s192
      %p194 = scmp.eq.s32.totalorder %s28, 0
      %p195 = por %p193, %p194
      %p196 = scmp.le.s32.totalorder 1, %s22
      %p197 = scmp.lt.s32.totalorder %s22, 3
      %p198 = pnand %p196, %p197
      %p199 = pneg %p198
      // Predicated region
      $region9: #{tpu_custom_call.1} parent=5 // pred_check
        _
      $region10: #{tpu_custom_call.1} parent=5 // pred_check_branch
        %201 = sbr.rel (%p198) target = $region12
      $region11: #{tpu_custom_call.1} parent=5 // pred_region
        %s202 = ssub.s32 %s22, 1
        // Predicated region
        $region13: #{tpu_custom_call.1} parent=11 // pred_check
          %p203 = pneg %p83
        $region14: #{tpu_custom_call.1} parent=11 // pred_check_branch
          %205 = sbr.rel (%p203) target = $region16
        $region15: #{tpu_custom_call.1} parent=11 // pred_region
          %s207 = ssub.s32 256, 256
          %208 = vsyncadd [#allocation6], %s207
          %s209 = sshll.u32 [#allocation5], 4
          %s210 = int_to_ptr.vmem [resolvable:$true] %s209
          %215 = dma.hbm_to_vmem [thread:$0]  %s1, 256, %s210, [#allocation6], 64, 64, 4
        $region16: #{tpu_custom_call.1} parent=11 // pred_fallthru
          _
        // Predicated region
        $region17: #{tpu_custom_call.1} parent=11 // pred_check
          %p216 = pneg %p104
        $region18: #{tpu_custom_call.1} parent=11 // pred_check_branch
          %218 = sbr.rel (%p216) target = $region20
        $region19: #{tpu_custom_call.1} parent=11 // pred_region
          %s220 = ssub.s32 16, 16
          %221 = vsyncadd [#allocation6], %s220
          %s223 = sshll.u32 [#allocation7], 4
          %s224 = int_to_ptr.vmem [resolvable:$true] %s223
          %226 = dma.hbm_to_vmem [thread:$0]  %s2, 16, %s224, [#allocation6]
        $region20: #{tpu_custom_call.1} parent=11 // pred_fallthru
          _
      $region12: #{tpu_custom_call.1} parent=5 // pred_fallthru
        _
      %p227 = scmp.lt.s32.totalorder %s22, 2
      // Predicated region
      $region21: #{tpu_custom_call.1} parent=5 // pred_check
        %p228 = pneg %p227
      $region22: #{tpu_custom_call.1} parent=5 // pred_check_branch
        %230 = sbr.rel (%p228) target = $region24
      $region23: #{tpu_custom_call.1} parent=5 // pred_region
        // Predicated region
        $region25: #{tpu_custom_call.1} parent=23 // pred_check
          %p231 = pneg %p56
        $region26: #{tpu_custom_call.1} parent=23 // pred_check_branch
          %233 = sbr.rel (%p231) target = $region28
        $region27: #{tpu_custom_call.1} parent=23 // pred_region
          %s234 = sand.u32 %s46, 1
          %s235 = scalar_lea.sflag [#allocation3], %s234
          %s236 = sand.u32 %s46, 1
          %s237 = smul.addr %s236, 8
          %s238 = scalar_lea.vmem [#allocation2], %s237
          %s240 = ssub.s32 128, 128
          %241 = vsyncadd %s235, %s240
          %s242 = sadd.s32 %s30, %s29
          %s243 = smul.addr %s242, 128
          %s244 = scalar_lea.hbm %s0, %s243
          %s246 = sshll.u32 %s238, 4
          %s247 = int_to_ptr.vmem [resolvable:$true] %s246
          %249 = dma.hbm_to_vmem [thread:$0]  %s244, 128, %s247, %s235
        $region28: #{tpu_custom_call.1} parent=23 // pred_fallthru
          _
      $region24: #{tpu_custom_call.1} parent=5 // pred_fallthru
        _
      %p250 = scmp.le.s32.totalorder 1, %s22
      %p251 = scmp.lt.s32.totalorder %s22, 3
      %p252 = pnand %p250, %p251
      %p253 = pneg %p252
      // Predicated region
      $region29: #{tpu_custom_call.1} parent=5 // pred_check
        _
      $region30: #{tpu_custom_call.1} parent=5 // pred_check_branch
        %255 = sbr.rel (%p252) target = $region32
      $region31: #{tpu_custom_call.1} parent=5 // pred_region
        %s256 = ssub.s32 %s22, 1
        %s257 = sand.u32 %s49, 1
        %s258 = scalar_lea.sflag [#allocation3], %s257
        %s259 = sand.u32 %s49, 1
        %s260 = smul.addr %s259, 8
        %s261 = scalar_lea.vmem [#allocation2], %s260
        // Predicated region
        $region33: #{tpu_custom_call.1} parent=31 // pred_check
          %p262 = pneg %p62
        $region34: #{tpu_custom_call.1} parent=31 // pred_check_branch
          %264 = sbr.rel (%p262) target = $region36
        $region35: #{tpu_custom_call.1} parent=31 // pred_region
          %265 = dma.done %s258, 128
        $region36: #{tpu_custom_call.1} parent=31 // pred_fallthru
          _
        // Predicated region
        $region37: #{tpu_custom_call.1} parent=31 // pred_check
          %p266 = pneg %p83
        $region38: #{tpu_custom_call.1} parent=31 // pred_check_branch
          %268 = sbr.rel (%p266) target = $region40
        $region39: #{tpu_custom_call.1} parent=31 // pred_region
          %269 = dma.done [#allocation6], 256
        $region40: #{tpu_custom_call.1} parent=31 // pred_fallthru
          _
        // Predicated region
        $region41: #{tpu_custom_call.1} parent=31 // pred_check
          %p270 = pneg %p104
        $region42: #{tpu_custom_call.1} parent=31 // pred_check_branch
          %272 = sbr.rel (%p270) target = $region44
        $region43: #{tpu_custom_call.1} parent=31 // pred_region
          %273 = dma.done [#allocation6], 16
        $region44: #{tpu_custom_call.1} parent=31 // pred_fallthru
          _
        %s274 = sand.u32 %s49, 1
        %s275 = scalar_lea.sflag [#allocation3], %s274
        %s276 = sand.u32 %s49, 1
        %s277 = smul.addr %s276, 8
        %s278 = scalar_lea.vmem [#allocation2], %s277
        %p279 = pneg %p62
        %p280 = pneg %p59
        %p281 = pneg %p83
        %p282 = pneg %p80
        %p283 = pneg %p104
        %p284 = pneg %p101
        %p285 = pneg %p132
        %p286 = pneg %p129
        %s287 = sand.u32 %s119, 1
        %s288 = scalar_lea.sflag [#allocation4], %s287
        %s289 = sand.u32 %s119, 1
        %s290 = smul.addr %s289, 4
        %s291 = scalar_lea.vmem [#allocation8], %s290
        %p292 = pneg %p160
        %p293 = pneg %p157
        %s294 = sand.u32 %s27, 1
        %s295 = scalar_lea.sflag [#allocation10], %s294
        %s296 = sand.u32 %s147, 1
        %s297 = smul.addr %s296, 4
        %s298 = scalar_lea.vmem [#allocation9], %s297
        %p299 = pneg %p188
        %p300 = pneg %p185
        %s301 = sand.u32 %s27, 1
        %s302 = scalar_lea.sflag [#allocation10], %s301
        %s303 = sand.u32 %s175, 1
        %s304 = smul.addr %s303, 4
        %s305 = scalar_lea.vmem [#allocation11], %s304
        %v307 = vld [vmem:[%s261] sm:$0xff]
        %v308 = vpack.c.bf16 %v307, %v307
        %v309 = vld [vmem:[#allocation5] sm:$0xf]
        %v310 = vld [vmem:[#allocation5 + $0x4] sm:$0xf]
        %v311 = vld [vmem:[#allocation5 + $0x8] sm:$0xf]
        %v312 = vld [vmem:[#allocation5 + $0xc] sm:$0xf]
        %v313 = vld [vmem:[#allocation7] sm:$0x1]
        %v315 = vlaneseq
        %v316 = vshrl.u32 %v315, 7
        %v317 = vsub.s32 0, %v316
        %v318 = vrot.slane %v313, %v317
        %v324 = vunpack.c.l.b16 %v309
        %v325 = vunpack.c.l.b16 %v310
        %v326 = vunpack.c.l.b16 %v311
        %v327 = vunpack.c.l.b16 %v312
        %v328 = vpack.c.b16 %v325, %v324
        %v329 = vpack.c.b16 %v327, %v326
        %vm332 = vcmask 261120
        %v334 = vsel %vm332, %v308, 0
        %336 = vmatprep.subr.bf16.mxu0 0
        %337 = vmatpush1.bf16.msra.mxu0 %v328
        %338 = vmatprep.subr.bf16.mxu0 0
        %339 = vmatpush1.bf16.msra.mxu0 %v329
        %340 = vmatprep.subr.bf16.mxu0 0
        %341 = vmatpush1.bf16.msra.mxu0 0
        %342 = vmatprep.subr.bf16.mxu0 0
        %343 = vmatpush1.bf16.msra.mxu0 0
        %344 = vmatprep.subr.bf16.mxu0 0
        %345 = vmatpush1.bf16.msra.mxu0 0
        %346 = vmatprep.subr.bf16.mxu0 0
        %347 = vmatpush1.bf16.msra.mxu0 0
        %348 = vmatprep.subr.bf16.mxu0 0
        %349 = vmatpush1.bf16.msra.mxu0 0
        %350 = vmatprep.subr.bf16.mxu0 0
        %351 = vmatpush1.bf16.msra.mxu0 0
        %352 = vmatprep.subr.bf16.mxu0 0
        %353 = vmatpush1.bf16.msra.mxu0 0
        %354 = vmatprep.subr.bf16.mxu0 0
        %355 = vmatpush1.bf16.msra.mxu0 0
        %356 = vmatprep.subr.bf16.mxu0 0
        %357 = vmatpush1.bf16.msra.mxu0 0
        %358 = vmatprep.subr.bf16.mxu0 0
        %359 = vmatpush1.bf16.msra.mxu0 0
        %360 = vmatprep.subr.bf16.mxu0 0
        %361 = vmatpush1.bf16.msra.mxu0 0
        %362 = vmatprep.subr.bf16.mxu0 0
        %363 = vmatpush1.bf16.msra.mxu0 0
        %364 = vmatprep.subr.bf16.mxu0 0
        %365 = vmatpush1.bf16.msra.mxu0 0
        %366 = vmatprep.subr.bf16.mxu0 0
        %367 = vmatpush1.bf16.msra.mxu0 0
        %368 = vmatprep.mubr.bf16.mxu0 0
        %369 = vmatmul.mubr.bf16.gmra.mrb[0].mxu0 %v334
        %v370 = vpop.f32.mrb[0].mxu0
        %v371 = vadd.f32 %v318, %v370
        %v372 = vpop.f32.mrb[0].mxu0
        %v373 = vpop.f32.mrb[0].mxu0
        %v374 = vpop.f32.mrb[0].mxu0
        %375 = vdwg.mxu0
        %v376 = vpack.c.bf16 %v371, %v371
        %vm377 = vcmask 257024
        %378 = vst.msk [vmem:[%s291] sm:$0xf] %vm377, %v376
        %v380 = vunpack.c.l.b16 %v376
        %v381 = vpack.c.b16 %v380, %v380
        %382 = vrot.lane.b32.xlu0 %v381, 96
        %v383 = vpop.permute.xlu0 %382
        %385 = vst.msk [vmem:[%s298] sm:$0xf] %vm377, %v383
        %386 = vrot.lane.b32.xlu0 %v381, 64
        %v387 = vpop.permute.xlu0 %386
        %389 = vst.msk [vmem:[%s305] sm:$0xf] %vm377, %v387
        %s390 = sand.u32 %s119, 1
        %s391 = scalar_lea.sflag [#allocation4], %s390
        %s392 = sand.u32 %s119, 1
        %s393 = smul.addr %s392, 4
        %s394 = scalar_lea.vmem [#allocation8], %s393
        %s395 = sand.u32 %s27, 1
        %s396 = scalar_lea.sflag [#allocation10], %s395
        %s397 = sand.u32 %s147, 1
        %s398 = smul.addr %s397, 4
        %s399 = scalar_lea.vmem [#allocation9], %s398
        %s400 = sand.u32 %s27, 1
        %s401 = scalar_lea.sflag [#allocation10], %s400
        %s402 = sand.u32 %s175, 1
        %s403 = smul.addr %s402, 4
        %s404 = scalar_lea.vmem [#allocation11], %s403
        // Predicated region
        $region45: #{tpu_custom_call.1} parent=31 // pred_check
          %p405 = pneg %p129
        $region46: #{tpu_custom_call.1} parent=31 // pred_check_branch
          %407 = sbr.rel (%p405) target = $region48
        $region47: #{tpu_custom_call.1} parent=31 // pred_region
          %s409 = ssub.s32 64, 64
          %410 = vsyncadd %s391, %s409
          %s411 = sadd.s32 %s32, %s31
          %s412 = smul.addr %s411, 64
          %s413 = scalar_lea.hbm %s3, %s412
          %s415 = sshll.u32 %s394, 4
          %s416 = int_to_ptr.vmem [resolvable:$true] %s415
          %418 = dma.vmem_to_hbm [thread:$0]  %s416, 64, %s413, %s391
        $region48: #{tpu_custom_call.1} parent=31 // pred_fallthru
          _
        // Predicated region
        $region49: #{tpu_custom_call.1} parent=31 // pred_check
          %p419 = pneg %p157
        $region50: #{tpu_custom_call.1} parent=31 // pred_check_branch
          %421 = sbr.rel (%p419) target = $region52
        $region51: #{tpu_custom_call.1} parent=31 // pred_region
          %s423 = ssub.s32 64, 64
          %424 = vsyncadd %s396, %s423
          %s425 = sadd.s32 %s32, %s31
          %s426 = smul.addr %s425, 64
          %s427 = scalar_lea.hbm %s4, %s426
          %s429 = sshll.u32 %s399, 4
          %s430 = int_to_ptr.vmem [resolvable:$true] %s429
          %432 = dma.vmem_to_hbm [thread:$0]  %s430, 64, %s427, %s396
        $region52: #{tpu_custom_call.1} parent=31 // pred_fallthru
          _
        // Predicated region
        $region53: #{tpu_custom_call.1} parent=31 // pred_check
          %p433 = pneg %p185
        $region54: #{tpu_custom_call.1} parent=31 // pred_check_branch
          %435 = sbr.rel (%p433) target = $region56
        $region55: #{tpu_custom_call.1} parent=31 // pred_region
          %s437 = ssub.s32 64, 64
          %438 = vsyncadd %s401, %s437
          %s439 = sadd.s32 %s32, %s31
          %s440 = smul.addr %s439, 64
          %s441 = scalar_lea.hbm %s5, %s440
          %s443 = sshll.u32 %s404, 4
          %s444 = int_to_ptr.vmem [resolvable:$true] %s443
          %446 = dma.vmem_to_hbm [thread:$0]  %s444, 64, %s441, %s401
        $region56: #{tpu_custom_call.1} parent=31 // pred_fallthru
          _
      $region32: #{tpu_custom_call.1} parent=5 // pred_fallthru
        _
      %p447 = scmp.le.s32.totalorder 2, %s22
      // Predicated region
      $region57: #{tpu_custom_call.1} parent=5 // pred_check
        %p448 = pneg %p447
      $region58: #{tpu_custom_call.1} parent=5 // pred_check_branch
        %450 = sbr.rel (%p448) target = $region60
      $region59: #{tpu_custom_call.1} parent=5 // pred_region
        %s451 = ssub.s32 %s22, 2
        // Predicated region
        $region61: #{tpu_custom_call.1} parent=59 // pred_check
          %p452 = pneg %p135
        $region62: #{tpu_custom_call.1} parent=59 // pred_check_branch
          %454 = sbr.rel (%p452) target = $region64
        $region63: #{tpu_custom_call.1} parent=59 // pred_region
          %s455 = sand.u32 %s120, 1
          %s456 = scalar_lea.sflag [#allocation4], %s455
          %s457 = sand.u32 %s120, 1
          %s458 = smul.addr %s457, 4
          %s459 = scalar_lea.vmem [#allocation8], %s458
          %460 = dma.done %s456, 64
        $region64: #{tpu_custom_call.1} parent=59 // pred_fallthru
          _
        // Predicated region
        $region65: #{tpu_custom_call.1} parent=59 // pred_check
          %p461 = pneg %p163
        $region66: #{tpu_custom_call.1} parent=59 // pred_check_branch
          %463 = sbr.rel (%p461) target = $region68
        $region67: #{tpu_custom_call.1} parent=59 // pred_region
          %s464 = sand.u32 %s28, 1
          %s465 = scalar_lea.sflag [#allocation10], %s464
          %s466 = sand.u32 %s148, 1
          %s467 = smul.addr %s466, 4
          %s468 = scalar_lea.vmem [#allocation9], %s467
          %469 = dma.done %s465, 64
        $region68: #{tpu_custom_call.1} parent=59 // pred_fallthru
          _
        // Predicated region
        $region69: #{tpu_custom_call.1} parent=59 // pred_check
          %p470 = pneg %p191
        $region70: #{tpu_custom_call.1} parent=59 // pred_check_branch
          %472 = sbr.rel (%p470) target = $region72
        $region71: #{tpu_custom_call.1} parent=59 // pred_region
          %s473 = sand.u32 %s28, 1
          %s474 = scalar_lea.sflag [#allocation10], %s473
          %s475 = sand.u32 %s176, 1
          %s476 = smul.addr %s475, 4
          %s477 = scalar_lea.vmem [#allocation11], %s476
          %478 = dma.done %s474, 64
        $region72: #{tpu_custom_call.1} parent=59 // pred_fallthru
          _
      $region60: #{tpu_custom_call.1} parent=5 // pred_fallthru
        _
    $region6: #{tpu_custom_call.1} parent=1 // loop_footer
      %s26 = sadd.s32 1, %s22
    $region7: #{tpu_custom_call.1} parent=1 // loop_footer_branch
      %21 = sbr.rel target = $region3
    $region8: #{tpu_custom_call.1} parent=1 // loop_exit
      _
    %479 = vsyncpa [#allocation3], 1
    %s480 = scalar_lea.sflag [#allocation3], 1
    %481 = vsyncpa %s480, 1
    %482 = vsyncpa [#allocation6], 1
    %483 = vsyncpa [#allocation4], 1
    %s484 = scalar_lea.sflag [#allocation4], 1
    %485 = vsyncpa %s484, 1
    %486 = vsyncpa [#allocation10], 1
    %s487 = scalar_lea.sflag [#allocation10], 1
    %488 = vsyncpa %s487, 1

</llo_original>
